<compile_context>
chip_gen: v7x
topology: tpu7x:2x2x1
jax: 0.10.0
libtpu: 0.0.40
codegen_flags: <defaults>
</compile_context>

<pallas_src>
import functools

import jax
import jax.numpy as jnp
from jax import lax
from jax.experimental import pallas as pl
from jax.experimental.pallas import tpu as pltpu

LANE = 128
SUBLANE = 8
MAX_TILE_ROWS = 1024  # 1024 x 128 f32 = 512 KiB per input block


def _loss_partials_kernel(x_ref, y_ref, out_ref, *, tile_rows, valid_rows,
                          mask_tail):
    """Write six (8,128) per-(sublane,lane) partial sums for this row tile.

    out_ref rows: 0=sum(x*y) 1=sum(x) 2=sum(y) 3=sum(x*x) 4=sum(y*y)
                  5=sum((x-y)^2)
    """
    x = x_ref[...].astype(jnp.float32)
    y = y_ref[...].astype(jnp.float32)

    if mask_tail:
        # The last grid step maps past `valid_rows`; Pallas pads that block
        # with undefined data, so zero the out-of-range rows first.
        row0 = pl.program_id(0) * tile_rows
        row_ids = lax.broadcasted_iota(jnp.int32, (tile_rows, 1), 0) + row0
        ok = row_ids < valid_rows
        x = jnp.where(ok, x, 0.0)
        y = jnp.where(ok, y, 0.0)

    d = x - y

    def fold(v):
        # (T,128) -> (T//8, 8, 128) is a tile-aligned reshape; summing the
        # leading axis is a chain of full-vreg VPU adds (no sublane reduce,
        # no sub-vreg stores).
        return v.reshape(tile_rows // SUBLANE, SUBLANE, LANE).sum(axis=0)

    out_ref[0] = fold(x * y)
    out_ref[1] = fold(x)
    out_ref[2] = fold(y)
    out_ref[3] = fold(x * x)
    out_ref[4] = fold(y * y)
    out_ref[5] = fold(d * d)


def _run_partials(x2d, y2d, tile_rows, mask_tail):
    rows = x2d.shape[0]
    num_steps = pl.cdiv(rows, tile_rows)
    kernel = functools.partial(
        _loss_partials_kernel,
        tile_rows=tile_rows,
        valid_rows=rows,
        mask_tail=mask_tail,
    )
    bytes_accessed = 2 * rows * LANE * 4 + num_steps * 6 * SUBLANE * LANE * 4
    flops = 11 * rows * LANE  # 4 mul + 1 sub + 6 accumulate adds per element
    return pl.pallas_call(
        kernel,
        out_shape=jax.ShapeDtypeStruct((num_steps * 6, SUBLANE, LANE),
                                       jnp.float32),
        grid_spec=pltpu.PrefetchScalarGridSpec(
            num_scalar_prefetch=0,
            grid=(num_steps,),
            in_specs=[
                pl.BlockSpec((tile_rows, LANE), lambda i: (i, 0)),
                pl.BlockSpec((tile_rows, LANE), lambda i: (i, 0)),
            ],
            out_specs=pl.BlockSpec((6, SUBLANE, LANE), lambda i: (i, 0, 0)),
        ),
        compiler_params=pltpu.CompilerParams(
            dimension_semantics=("parallel",),
            vmem_limit_bytes=32 * 1024 * 1024,
        ),
        cost_estimate=pl.CostEstimate(
            flops=flops, transcendentals=0, bytes_accessed=bytes_accessed),
    )(x2d, y2d)


@functools.partial(jax.jit, static_argnames=("alph",))
def my_loss(inp, target, alph):
    """JAX/Pallas equivalent of MyLoss(alph).forward(input, target)."""
    # NOTE: mirrors the PyTorch reference exactly — n is the *batch size*
    # (input.size()[0]), not the element count.  This is intentional.
    n = float(inp.shape[0])
    total = inp.size  # element count, used for the MSE mean

    xf = inp.reshape(-1).astype(jnp.float32)
    yf = target.reshape(-1).astype(jnp.float32)

    chunk = SUBLANE * LANE
    pad = (-total) % chunk
    if pad:
        # Zero pad contributes 0 to every accumulated sum.  This copy only
        # triggers when numel is not already a multiple of 8*128 (the common
        # conv-tensor case needs no pad at all).
        xf = jnp.pad(xf, (0, pad))
        yf = jnp.pad(yf, (0, pad))

    rows = (total + pad) // LANE  # multiple of 8
    x2d = xf.reshape(rows, LANE)
    y2d = yf.reshape(rows, LANE)

    tile_rows = min(MAX_TILE_ROWS, rows)   # both are multiples of 8
    mask_tail = (rows % tile_rows) != 0
    num_steps = pl.cdiv(rows, tile_rows)

    partials = _run_partials(x2d, y2d, tile_rows, mask_tail)
    sums = partials.reshape(num_steps, 6, SUBLANE * LANE).sum(axis=(0, 2))

    sum_xy = sums[0]
    sum_x = sums[1]
    sum_y = sums[2]
    sum_x2 = sums[3]
    sum_y2 = sums[4]
    sum_sq = sums[5]

    pcc = (n * sum_xy - sum_x * sum_y) / jnp.sqrt(
        (n * sum_x2 - sum_x * sum_x) * (n * sum_y2 - sum_y * sum_y))
    mse = sum_sq / total
    return alph * (1.0 - jnp.abs(pcc)) + (1.0 - alph) * mse


def _reference(inp, target, alph):
    x = inp.astype(jnp.float32)
    y = target.astype(jnp.float32)
    n = float(inp.shape[0])
    sum_xy = jnp.sum(x * y)
    sum_x = jnp.sum(x)
    sum_y = jnp.sum(y)
    sum_x2 = jnp.sum(x * x)
    sum_y2 = jnp.sum(y * y)
    pcc = (n * sum_xy - sum_x * sum_y) / jnp.sqrt(
        (n * sum_x2 - sum_x * sum_x) * (n * sum_y2 - sum_y * sum_y))
    mse = jnp.mean((x - y) ** 2)
    return alph * (1.0 - jnp.abs(pcc)) + (1.0 - alph) * mse


if __name__ == "__main__":
    key = jax.random.PRNGKey(0)
    k1, k2, k3, k4 = jax.random.split(key, 4)
    alph = 0.5

    # NCHW-style prediction/target pair (numel is a multiple of 8*128: no pad).
    inp = jax.random.normal(k1, (2, 4, 16, 16), dtype=jnp.float32)
    target = jax.random.normal(k2, (2, 4, 16, 16), dtype=jnp.float32)
    loss = jax.block_until_ready(my_loss(inp, target, alph))
    ref = _reference(inp, target, alph)
    assert jnp.allclose(loss, ref, rtol=1e-5, atol=1e-5), (loss, ref)

    # Odd element count exercises the wrapper-side pad path.
    inp2 = jax.random.normal(k3, (2, 3, 10, 10), dtype=jnp.float32)
    tgt2 = jax.random.normal(k4, (2, 3, 10, 10), dtype=jnp.float32)
    loss2 = jax.block_until_ready(my_loss(inp2, tgt2, alph))
    ref2 = _reference(inp2, tgt2, alph)
    assert jnp.allclose(loss2, ref2, rtol=1e-5, atol=1e-5), (loss2, ref2)

    print("KERNEL_OK")
</pallas_src>

<mosaic_0001>
module attributes {stable_mosaic.version = 11 : i64} {
  func.func @_loss_partials_kernel(%arg0: i32, %arg1: memref<16x128xf32, #tpu.memory_space<vmem>>, %arg2: memref<16x128xf32, #tpu.memory_space<vmem>>, %arg3: memref<6x8x128xf32, #tpu.memory_space<vmem>>) attributes {dimension_semantics = [#tpu.dimension_semantics<parallel>], iteration_bounds = array<i64: 1>, scalar_prefetch = 0 : i64, scratch_operands = 0 : i64, tpu.core_type = #tpu.core_type<tc>, window_params = [{transform_indices = @transform_0, window_bounds = array<i64: 16, 128>}, {transform_indices = @transform_1, window_bounds = array<i64: 16, 128>}, {transform_indices = @transform_2, window_bounds = array<i64: 6, 8, 128>}]} {
    %c0 = arith.constant 0 : index
    %c0_0 = arith.constant 0 : index
    %0 = vector.load %arg1[%c0, %c0_0] : memref<16x128xf32, #tpu.memory_space<vmem>>, vector<16x128xf32>
    %c0_1 = arith.constant 0 : index
    %c0_2 = arith.constant 0 : index
    %1 = vector.load %arg2[%c0_1, %c0_2] : memref<16x128xf32, #tpu.memory_space<vmem>>, vector<16x128xf32>
    %2 = arith.subf %0, %1 : vector<16x128xf32>
    %3 = arith.mulf %0, %1 : vector<16x128xf32>
    %4 = vector.shape_cast %3 : vector<16x128xf32> to vector<2x8x128xf32>
    %cst = arith.constant dense<0.000000e+00> : vector<8x128xf32>
    %5 = vector.multi_reduction <add>, %4, %cst [0] : vector<2x8x128xf32> to vector<8x128xf32>
    %c0_3 = arith.constant 0 : index
    %c0_4 = arith.constant 0 : index
    %c0_5 = arith.constant 0 : index
    %6 = vector.load %arg3[%c0_3, %c0_4, %c0_5] : memref<6x8x128xf32, #tpu.memory_space<vmem>>, vector<1x8x128xf32>
    %7 = vector.shape_cast %6 : vector<1x8x128xf32> to vector<8x128xf32>
    %8 = vector.shape_cast %5 : vector<8x128xf32> to vector<1x8x128xf32>
    tpu.vector_store %arg3[%c0_3, %c0_4, %c0_5], %8 {strides = array<i32>} : memref<6x8x128xf32, #tpu.memory_space<vmem>>, vector<1x8x128xf32>,
    %9 = vector.shape_cast %0 : vector<16x128xf32> to vector<2x8x128xf32>
    %cst_6 = arith.constant dense<0.000000e+00> : vector<8x128xf32>
    %10 = vector.multi_reduction <add>, %9, %cst_6 [0] : vector<2x8x128xf32> to vector<8x128xf32>
    %c1 = arith.constant 1 : index
    %c0_7 = arith.constant 0 : index
    %c0_8 = arith.constant 0 : index
    %11 = vector.load %arg3[%c1, %c0_7, %c0_8] : memref<6x8x128xf32, #tpu.memory_space<vmem>>, vector<1x8x128xf32>
    %12 = vector.shape_cast %11 : vector<1x8x128xf32> to vector<8x128xf32>
    %13 = vector.shape_cast %10 : vector<8x128xf32> to vector<1x8x128xf32>
    tpu.vector_store %arg3[%c1, %c0_7, %c0_8], %13 {strides = array<i32>} : memref<6x8x128xf32, #tpu.memory_space<vmem>>, vector<1x8x128xf32>,
    %14 = vector.shape_cast %1 : vector<16x128xf32> to vector<2x8x128xf32>
    %cst_9 = arith.constant dense<0.000000e+00> : vector<8x128xf32>
    %15 = vector.multi_reduction <add>, %14, %cst_9 [0] : vector<2x8x128xf32> to vector<8x128xf32>
    %c2 = arith.constant 2 : index
    %c0_10 = arith.constant 0 : index
    %c0_11 = arith.constant 0 : index
    %16 = vector.load %arg3[%c2, %c0_10, %c0_11] : memref<6x8x128xf32, #tpu.memory_space<vmem>>, vector<1x8x128xf32>
    %17 = vector.shape_cast %16 : vector<1x8x128xf32> to vector<8x128xf32>
    %18 = vector.shape_cast %15 : vector<8x128xf32> to vector<1x8x128xf32>
    tpu.vector_store %arg3[%c2, %c0_10, %c0_11], %18 {strides = array<i32>} : memref<6x8x128xf32, #tpu.memory_space<vmem>>, vector<1x8x128xf32>,
    %19 = arith.mulf %0, %0 : vector<16x128xf32>
    %20 = vector.shape_cast %19 : vector<16x128xf32> to vector<2x8x128xf32>
    %cst_12 = arith.constant dense<0.000000e+00> : vector<8x128xf32>
    %21 = vector.multi_reduction <add>, %20, %cst_12 [0] : vector<2x8x128xf32> to vector<8x128xf32>
    %c3 = arith.constant 3 : index
    %c0_13 = arith.constant 0 : index
    %c0_14 = arith.constant 0 : index
    %22 = vector.load %arg3[%c3, %c0_13, %c0_14] : memref<6x8x128xf32, #tpu.memory_space<vmem>>, vector<1x8x128xf32>
    %23 = vector.shape_cast %22 : vector<1x8x128xf32> to vector<8x128xf32>
    %24 = vector.shape_cast %21 : vector<8x128xf32> to vector<1x8x128xf32>
    tpu.vector_store %arg3[%c3, %c0_13, %c0_14], %24 {strides = array<i32>} : memref<6x8x128xf32, #tpu.memory_space<vmem>>, vector<1x8x128xf32>,
    %25 = arith.mulf %1, %1 : vector<16x128xf32>
    %26 = vector.shape_cast %25 : vector<16x128xf32> to vector<2x8x128xf32>
    %cst_15 = arith.constant dense<0.000000e+00> : vector<8x128xf32>
    %27 = vector.multi_reduction <add>, %26, %cst_15 [0] : vector<2x8x128xf32> to vector<8x128xf32>
    %c4 = arith.constant 4 : index
    %c0_16 = arith.constant 0 : index
    %c0_17 = arith.constant 0 : index
    %28 = vector.load %arg3[%c4, %c0_16, %c0_17] : memref<6x8x128xf32, #tpu.memory_space<vmem>>, vector<1x8x128xf32>
    %29 = vector.shape_cast %28 : vector<1x8x128xf32> to vector<8x128xf32>
    %30 = vector.shape_cast %27 : vector<8x128xf32> to vector<1x8x128xf32>
    tpu.vector_store %arg3[%c4, %c0_16, %c0_17], %30 {strides = array<i32>} : memref<6x8x128xf32, #tpu.memory_space<vmem>>, vector<1x8x128xf32>,
    %31 = arith.mulf %2, %2 : vector<16x128xf32>
    %32 = vector.shape_cast %31 : vector<16x128xf32> to vector<2x8x128xf32>
    %cst_18 = arith.constant dense<0.000000e+00> : vector<8x128xf32>
    %33 = vector.multi_reduction <add>, %32, %cst_18 [0] : vector<2x8x128xf32> to vector<8x128xf32>
    %c5 = arith.constant 5 : index
    %c0_19 = arith.constant 0 : index
    %c0_20 = arith.constant 0 : index
    %34 = vector.load %arg3[%c5, %c0_19, %c0_20] : memref<6x8x128xf32, #tpu.memory_space<vmem>>, vector<1x8x128xf32>
    %35 = vector.shape_cast %34 : vector<1x8x128xf32> to vector<8x128xf32>
    %36 = vector.shape_cast %33 : vector<8x128xf32> to vector<1x8x128xf32>
    tpu.vector_store %arg3[%c5, %c0_19, %c0_20], %36 {strides = array<i32>} : memref<6x8x128xf32, #tpu.memory_space<vmem>>, vector<1x8x128xf32>,
    return
  }
  func.func @transform_0(%arg0: i32) -> (i32, i32) {
    %c0_i32 = arith.constant 0 : i32
    %c0_i32_0 = arith.constant 0 : i32
    return %arg0, %c0_i32 : i32, i32
  }
  func.func @transform_1(%arg0: i32) -> (i32, i32) {
    %c0_i32 = arith.constant 0 : i32
    %c0_i32_0 = arith.constant 0 : i32
    return %arg0, %c0_i32 : i32, i32
  }
  func.func @transform_2(%arg0: i32) -> (i32, i32, i32) {
    %c0_i32 = arith.constant 0 : i32
    %c0_i32_0 = arith.constant 0 : i32
    %c0_i32_1 = arith.constant 0 : i32
    return %arg0, %c0_i32, %c0_i32_0 : i32, i32, i32
  }
}

</mosaic_0001>

<llo_original>
// kernel: my_loss.1
$region0: #{my_loss.1}
  #allocation0 [shape = 'u32[]', space=smem, size = 0x4, offset = 0x4, fixed_abs, tag = 'smem constant byte address 0x4 - core index']
  #allocation1 [shape = 'u32[144,128]{1,0:T(1,128)}', space=vmem, size = 0x12000, scoped, tag = 'internal scratch']
  %s0 = inlined_call_operand.vmem [shape: f32[16,128], index: 0, kind: input, shape index: {}]
  %s1 = inlined_call_operand.vmem [shape: f32[16,128], index: 1, kind: input, shape index: {}]
  %s2 = inlined_call_operand.vmem [shape: f32[6,8,128], index: 2, kind: output, shape index: {}]
  %s3 = sld [smem:[#allocation0]]
  $region18: #{my_loss.1} parent=0
    _
  %s5 = ssub.s32 1, %s3
  %s6 = scalar_select 0, %s5, %s3
  // Predicated region
  $region2: #{my_loss.1} parent=0 // pred_check
    _
  $region3: #{my_loss.1} parent=0 // pred_check_branch
    %8 = sbr.rel (0) target = $region5
  $region4: #{my_loss.1} parent=0 // pred_region
    _
  $region5: #{my_loss.1} parent=0 // pred_fallthru
    _
  // Predicated region
  $region6: #{my_loss.1} parent=0 // pred_check
    _
  $region7: #{my_loss.1} parent=0 // pred_check_branch
    %10 = sbr.rel (0) target = $region9
  $region8: #{my_loss.1} parent=0 // pred_region
    _
  $region9: #{my_loss.1} parent=0 // pred_fallthru
    _
  %v11 = vld [vmem:[%s0] sm:$0xff]
  %v12 = vld [vmem:[%s0 + $0x8] sm:$0xff]
  %v13 = vld [vmem:[%s1] sm:$0xff]
  %v14 = vld [vmem:[%s1 + $0x8] sm:$0xff]
  %v15 = vsub.f32 %v11, %v13
  %v16 = vsub.f32 %v12, %v14
  %v17 = vmul.f32 %v11, %v13
  %v18 = vmul.f32 %v12, %v14
  %v19 = vadd.f32 %v17, %v18
  %20 = vst [vmem:[%s2] sm:$0xff] %v19
  %v21 = vadd.f32 %v11, %v12
  %s22 = scalar_lea.vmem %s2, 8
  %23 = vst [vmem:[%s22] sm:$0xff] %v21
  %v24 = vadd.f32 %v13, %v14
  %s25 = scalar_lea.vmem %s2, 16
  %26 = vst [vmem:[%s25] sm:$0xff] %v24
  %v27 = vmul.f32 %v11, %v11
  %v28 = vmul.f32 %v12, %v12
  %v29 = vadd.f32 %v27, %v28
  %s30 = scalar_lea.vmem %s2, 24
  %31 = vst [vmem:[%s30] sm:$0xff] %v29
  %v32 = vmul.f32 %v13, %v13
  %v33 = vmul.f32 %v14, %v14
  %v34 = vadd.f32 %v32, %v33
  %s35 = scalar_lea.vmem %s2, 32
  %36 = vst [vmem:[%s35] sm:$0xff] %v34
  %v37 = vmul.f32 %v15, %v15
  %v38 = vmul.f32 %v16, %v16
  %v39 = vadd.f32 %v37, %v38
  %s40 = scalar_lea.vmem %s2, 40
  %41 = vst [vmem:[%s40] sm:$0xff] %v39
  // Predicated region
  $region10: #{my_loss.1} parent=0 // pred_check
    _
  $region11: #{my_loss.1} parent=0 // pred_check_branch
    %43 = sbr.rel (0) target = $region13
  $region12: #{my_loss.1} parent=0 // pred_region
    _
  $region13: #{my_loss.1} parent=0 // pred_fallthru
    _
  // Predicated region
  $region14: #{my_loss.1} parent=0 // pred_check
    _
  $region15: #{my_loss.1} parent=0 // pred_check_branch
    %45 = sbr.rel (0) target = $region17
  $region16: #{my_loss.1} parent=0 // pred_region
    _
  $region17: #{my_loss.1} parent=0 // pred_fallthru
    _

</llo_original>
